<compile_context>
chip_gen: v5e
topology: v5e:2x2
jax: 0.10.0
libtpu: 0.0.40
codegen_flags: <defaults>
</compile_context>

<pallas_src>
import jax
import jax.numpy as jnp
from jax.experimental import pallas as pl
from jax.experimental.pallas import tpu as pltpu

EPS = 1e-5
MATMUL_DTYPE = jnp.bfloat16  # MXU-native on v6e/v7x; accumulation stays f32.


def _linear_bn_relu(h, w, gamma, beta):
    """(bias-free) Linear -> BatchNorm1d (batch stats) -> ReLU.

    The Linear bias is omitted on purpose: BN subtracts the per-feature batch
    mean, so a constant per-feature bias cancels exactly.  The BN affine is
    folded into a single scale so normalize+affine is one mul-add pass.
    """
    z = jnp.dot(h.astype(w.dtype), w, preferred_element_type=jnp.float32)
    mu = jnp.mean(z, axis=0, keepdims=True)
    zc = z - mu
    var = jnp.mean(zc * zc, axis=0, keepdims=True)          # biased variance
    scale = gamma * jax.lax.rsqrt(var + EPS)                 # rsqrt -> EUP slot
    return jnp.maximum(zc * scale + beta, 0.0)


def encoder_kernel(x_ref,
                   w1_ref, g1_ref, be1_ref,
                   w2_ref, g2_ref, be2_ref,
                   w3_ref, g3_ref, be3_ref,
                   w4_ref, b4_ref,
                   out_ref):
    h = x_ref[...]
    h = _linear_bn_relu(h, w1_ref[...], g1_ref[...], be1_ref[...])
    h = _linear_bn_relu(h, w2_ref[...], g2_ref[...], be2_ref[...])
    h = _linear_bn_relu(h, w3_ref[...], g3_ref[...], be3_ref[...])
    out = jnp.dot(h.astype(w4_ref.dtype), w4_ref[...],
                  preferred_element_type=jnp.float32) + b4_ref[...]
    # Single lane-dense store; chunk(2, dim=1) happens in the wrapper.
    out_ref[...] = out


def encoder_forward(x, params, dim_out):
    B, dim_in = x.shape
    H = params["w1"].shape[1]

    # Weights feeding the MXU are shipped as bf16 (halves their DMA/VMEM
    # bytes); BN params and the final bias stay f32.
    flat = [
        params["w1"].astype(MATMUL_DTYPE), params["g1"], params["be1"],
        params["w2"].astype(MATMUL_DTYPE), params["g2"], params["be2"],
        params["w3"].astype(MATMUL_DTYPE), params["g3"], params["be3"],
        params["w4"].astype(MATMUL_DTYPE), params["b4"],
    ]
    vmem = pl.BlockSpec(memory_space=pltpu.MemorySpace.VMEM)

    flops = 2 * B * (dim_in * H + 2 * H * H + H * 2 * dim_out)
    bytes_accessed = (x.size * 4
                      + sum(int(p.size) * p.dtype.itemsize for p in flat)
                      + B * 2 * dim_out * 4)
    cost = pl.CostEstimate(flops=flops,
                           transcendentals=3 * H,           # rsqrt per BN layer
                           bytes_accessed=bytes_accessed)

    out = pl.pallas_call(
        encoder_kernel,
        out_shape=jax.ShapeDtypeStruct((B, 2 * dim_out), jnp.float32),
        in_specs=[vmem] * (1 + len(flat)),
        out_specs=vmem,
        cost_estimate=cost,
    )(x, *flat)

    # chunk(2, dim=1) outside the kernel.
    return out[:, :dim_out], out[:, dim_out:]


def init_params(key, dim_in, hidden, dim_out):
    ks = jax.random.split(key, 4)

    def lin(k, fan_in, fan_out):
        kw, kb = jax.random.split(k)
        scale = 1.0 / jnp.sqrt(fan_in)
        w = jax.random.uniform(kw, (fan_in, fan_out), jnp.float32, -scale, scale)
        b = jax.random.uniform(kb, (1, fan_out), jnp.float32, -scale, scale)
        return w, b

    w1, b1 = lin(ks[0], dim_in, hidden)
    w2, b2 = lin(ks[1], hidden, hidden)
    w3, b3 = lin(ks[2], hidden, hidden)
    w4, b4 = lin(ks[3], hidden, 2 * dim_out)
    ones = lambda n: jnp.ones((1, n), jnp.float32)
    zeros = lambda n: jnp.zeros((1, n), jnp.float32)
    return {
        "w1": w1, "b1": b1, "g1": ones(hidden), "be1": zeros(hidden),
        "w2": w2, "b2": b2, "g2": ones(hidden), "be2": zeros(hidden),
        "w3": w3, "b3": b3, "g3": ones(hidden), "be3": zeros(hidden),
        "w4": w4, "b4": b4,
    }


def encoder_reference(x, p):
    """Pure-JAX reference with PyTorch-module semantics (Linear WITH bias ->
    BatchNorm1d train mode -> ReLU, final Linear, chunk).  Matmul operands are
    cast to MATMUL_DTYPE (f32 accumulation) to mirror the kernel's precision
    regime; the bias-cancellation by BN makes the math match the kernel."""
    def mm(a, w):
        return jnp.dot(a.astype(MATMUL_DTYPE), w.astype(MATMUL_DTYPE),
                       preferred_element_type=jnp.float32)

    def lbr(h, w, b, g, be):
        z = mm(h, w) + b
        mu = jnp.mean(z, axis=0, keepdims=True)
        var = jnp.mean((z - mu) ** 2, axis=0, keepdims=True)
        return jnp.maximum((z - mu) * jax.lax.rsqrt(var + EPS) * g + be, 0.0)

    h = lbr(x, p["w1"], p["b1"], p["g1"], p["be1"])
    h = lbr(h, p["w2"], p["b2"], p["g2"], p["be2"])
    h = lbr(h, p["w3"], p["b3"], p["g3"], p["be3"])
    out = mm(h, p["w4"]) + p["b4"]
    d = out.shape[1] // 2
    return out[:, :d], out[:, d:]


if __name__ == "__main__":
    # B is a multiple of 128 so the MXU M dimension is filled (feedback item).
    B, DIM_IN, HIDDEN, DIM_OUT = 128, 16, 128, 8

    key = jax.random.PRNGKey(0)
    kx, kp = jax.random.split(key)
    x = jax.random.normal(kx, (B, DIM_IN), jnp.float32)
    params = init_params(kp, DIM_IN, HIDDEN, DIM_OUT)

    mean, logvar = encoder_forward(x, params, DIM_OUT)
    jax.block_until_ready((mean, logvar))

    ref_mean, ref_logvar = encoder_reference(x, params)
    assert mean.shape == (B, DIM_OUT) and logvar.shape == (B, DIM_OUT)
    assert jnp.allclose(mean, ref_mean, atol=2e-3, rtol=2e-3)
    assert jnp.allclose(logvar, ref_logvar, atol=2e-3, rtol=2e-3)

    print("KERNEL_OK")
</pallas_src>

<mosaic_0001>
module attributes {stable_mosaic.version = 11 : i64} {
  func.func @encoder_kernel(%arg0: memref<128x16xf32, #tpu.memory_space<vmem>>, %arg1: memref<16x128xbf16, #tpu.memory_space<vmem>>, %arg2: memref<1x128xf32, #tpu.memory_space<vmem>>, %arg3: memref<1x128xf32, #tpu.memory_space<vmem>>, %arg4: memref<128x128xbf16, #tpu.memory_space<vmem>>, %arg5: memref<1x128xf32, #tpu.memory_space<vmem>>, %arg6: memref<1x128xf32, #tpu.memory_space<vmem>>, %arg7: memref<128x128xbf16, #tpu.memory_space<vmem>>, %arg8: memref<1x128xf32, #tpu.memory_space<vmem>>, %arg9: memref<1x128xf32, #tpu.memory_space<vmem>>, %arg10: memref<128x16xbf16, #tpu.memory_space<vmem>>, %arg11: memref<1x16xf32, #tpu.memory_space<vmem>>, %arg12: memref<128x16xf32, #tpu.memory_space<vmem>>) attributes {dimension_semantics = [], scalar_prefetch = 0 : i64, scratch_operands = 0 : i64, tpu.core_type = #tpu.core_type<tc>} {
    %c0 = arith.constant 0 : index
    %c0_0 = arith.constant 0 : index
    %0 = vector.load %arg0[%c0, %c0_0] : memref<128x16xf32, #tpu.memory_space<vmem>>, vector<128x16xf32>
    %c0_1 = arith.constant 0 : index
    %c0_2 = arith.constant 0 : index
    %1 = vector.load %arg1[%c0_1, %c0_2] : memref<16x128xbf16, #tpu.memory_space<vmem>>, vector<16x128xbf16>
    %c0_3 = arith.constant 0 : index
    %c0_4 = arith.constant 0 : index
    %2 = vector.load %arg2[%c0_3, %c0_4] : memref<1x128xf32, #tpu.memory_space<vmem>>, vector<1x128xf32>
    %c0_5 = arith.constant 0 : index
    %c0_6 = arith.constant 0 : index
    %3 = vector.load %arg3[%c0_5, %c0_6] : memref<1x128xf32, #tpu.memory_space<vmem>>, vector<1x128xf32>
    %4 = arith.truncf %0 : vector<128x16xf32> to vector<128x16xbf16>
    %cst = arith.constant dense<0.000000e+00> : vector<128x128xf32>
    %5 = tpu.matmul %4, %1, %cst {dimension_numbers = #tpu.dot_dimension_numbers<[1], [0], [0], [1], [0, 0, 1, 1], [], []>} : vector<128x16xbf16>, vector<16x128xbf16>, vector<128x128xf32> -> vector<128x128xf32>
    %cst_7 = arith.constant dense<0.000000e+00> : vector<128xf32>
    %6 = vector.multi_reduction <add>, %5, %cst_7 [0] : vector<128x128xf32> to vector<128xf32>
    %7 = vector.shape_cast %6 : vector<128xf32> to vector<1x128xf32>
    %cst_8 = arith.constant 1.280000e+02 : f32
    %8 = vector.broadcast %cst_8 : f32 to vector<1x128xf32>
    %9 = arith.divf %7, %8 : vector<1x128xf32>
    %10 = vector.broadcast %9 : vector<1x128xf32> to vector<128x128xf32>
    %11 = arith.subf %5, %10 : vector<128x128xf32>
    %12 = arith.mulf %11, %11 : vector<128x128xf32>
    %cst_9 = arith.constant dense<0.000000e+00> : vector<128xf32>
    %13 = vector.multi_reduction <add>, %12, %cst_9 [0] : vector<128x128xf32> to vector<128xf32>
    %14 = vector.shape_cast %13 : vector<128xf32> to vector<1x128xf32>
    %cst_10 = arith.constant 1.280000e+02 : f32
    %15 = vector.broadcast %cst_10 : f32 to vector<1x128xf32>
    %16 = arith.divf %14, %15 : vector<1x128xf32>
    %cst_11 = arith.constant 9.99999974E-6 : f32
    %17 = vector.broadcast %cst_11 : f32 to vector<1x128xf32>
    %18 = arith.addf %16, %17 : vector<1x128xf32>
    %19 = math.rsqrt %18 : vector<1x128xf32>
    %20 = arith.mulf %2, %19 : vector<1x128xf32>
    %21 = vector.broadcast %20 : vector<1x128xf32> to vector<128x128xf32>
    %22 = arith.mulf %11, %21 : vector<128x128xf32>
    %23 = vector.broadcast %3 : vector<1x128xf32> to vector<128x128xf32>
    %24 = arith.addf %22, %23 : vector<128x128xf32>
    %cst_12 = arith.constant 0.000000e+00 : f32
    %25 = vector.broadcast %cst_12 : f32 to vector<128x128xf32>
    %26 = arith.maximumf %24, %25 : vector<128x128xf32>
    %c0_13 = arith.constant 0 : index
    %c0_14 = arith.constant 0 : index
    %27 = vector.load %arg4[%c0_13, %c0_14] : memref<128x128xbf16, #tpu.memory_space<vmem>>, vector<128x128xbf16>
    %c0_15 = arith.constant 0 : index
    %c0_16 = arith.constant 0 : index
    %28 = vector.load %arg5[%c0_15, %c0_16] : memref<1x128xf32, #tpu.memory_space<vmem>>, vector<1x128xf32>
    %c0_17 = arith.constant 0 : index
    %c0_18 = arith.constant 0 : index
    %29 = vector.load %arg6[%c0_17, %c0_18] : memref<1x128xf32, #tpu.memory_space<vmem>>, vector<1x128xf32>
    %30 = arith.truncf %26 : vector<128x128xf32> to vector<128x128xbf16>
    %cst_19 = arith.constant dense<0.000000e+00> : vector<128x128xf32>
    %31 = tpu.matmul %30, %27, %cst_19 {dimension_numbers = #tpu.dot_dimension_numbers<[1], [0], [0], [1], [0, 0, 1, 1], [], []>} : vector<128x128xbf16>, vector<128x128xbf16>, vector<128x128xf32> -> vector<128x128xf32>
    %cst_20 = arith.constant dense<0.000000e+00> : vector<128xf32>
    %32 = vector.multi_reduction <add>, %31, %cst_20 [0] : vector<128x128xf32> to vector<128xf32>
    %33 = vector.shape_cast %32 : vector<128xf32> to vector<1x128xf32>
    %cst_21 = arith.constant 1.280000e+02 : f32
    %34 = vector.broadcast %cst_21 : f32 to vector<1x128xf32>
    %35 = arith.divf %33, %34 : vector<1x128xf32>
    %36 = vector.broadcast %35 : vector<1x128xf32> to vector<128x128xf32>
    %37 = arith.subf %31, %36 : vector<128x128xf32>
    %38 = arith.mulf %37, %37 : vector<128x128xf32>
    %cst_22 = arith.constant dense<0.000000e+00> : vector<128xf32>
    %39 = vector.multi_reduction <add>, %38, %cst_22 [0] : vector<128x128xf32> to vector<128xf32>
    %40 = vector.shape_cast %39 : vector<128xf32> to vector<1x128xf32>
    %cst_23 = arith.constant 1.280000e+02 : f32
    %41 = vector.broadcast %cst_23 : f32 to vector<1x128xf32>
    %42 = arith.divf %40, %41 : vector<1x128xf32>
    %cst_24 = arith.constant 9.99999974E-6 : f32
    %43 = vector.broadcast %cst_24 : f32 to vector<1x128xf32>
    %44 = arith.addf %42, %43 : vector<1x128xf32>
    %45 = math.rsqrt %44 : vector<1x128xf32>
    %46 = arith.mulf %28, %45 : vector<1x128xf32>
    %47 = vector.broadcast %46 : vector<1x128xf32> to vector<128x128xf32>
    %48 = arith.mulf %37, %47 : vector<128x128xf32>
    %49 = vector.broadcast %29 : vector<1x128xf32> to vector<128x128xf32>
    %50 = arith.addf %48, %49 : vector<128x128xf32>
    %cst_25 = arith.constant 0.000000e+00 : f32
    %51 = vector.broadcast %cst_25 : f32 to vector<128x128xf32>
    %52 = arith.maximumf %50, %51 : vector<128x128xf32>
    %c0_26 = arith.constant 0 : index
    %c0_27 = arith.constant 0 : index
    %53 = vector.load %arg7[%c0_26, %c0_27] : memref<128x128xbf16, #tpu.memory_space<vmem>>, vector<128x128xbf16>
    %c0_28 = arith.constant 0 : index
    %c0_29 = arith.constant 0 : index
    %54 = vector.load %arg8[%c0_28, %c0_29] : memref<1x128xf32, #tpu.memory_space<vmem>>, vector<1x128xf32>
    %c0_30 = arith.constant 0 : index
    %c0_31 = arith.constant 0 : index
    %55 = vector.load %arg9[%c0_30, %c0_31] : memref<1x128xf32, #tpu.memory_space<vmem>>, vector<1x128xf32>
    %56 = arith.truncf %52 : vector<128x128xf32> to vector<128x128xbf16>
    %cst_32 = arith.constant dense<0.000000e+00> : vector<128x128xf32>
    %57 = tpu.matmul %56, %53, %cst_32 {dimension_numbers = #tpu.dot_dimension_numbers<[1], [0], [0], [1], [0, 0, 1, 1], [], []>} : vector<128x128xbf16>, vector<128x128xbf16>, vector<128x128xf32> -> vector<128x128xf32>
    %cst_33 = arith.constant dense<0.000000e+00> : vector<128xf32>
    %58 = vector.multi_reduction <add>, %57, %cst_33 [0] : vector<128x128xf32> to vector<128xf32>
    %59 = vector.shape_cast %58 : vector<128xf32> to vector<1x128xf32>
    %cst_34 = arith.constant 1.280000e+02 : f32
    %60 = vector.broadcast %cst_34 : f32 to vector<1x128xf32>
    %61 = arith.divf %59, %60 : vector<1x128xf32>
    %62 = vector.broadcast %61 : vector<1x128xf32> to vector<128x128xf32>
    %63 = arith.subf %57, %62 : vector<128x128xf32>
    %64 = arith.mulf %63, %63 : vector<128x128xf32>
    %cst_35 = arith.constant dense<0.000000e+00> : vector<128xf32>
    %65 = vector.multi_reduction <add>, %64, %cst_35 [0] : vector<128x128xf32> to vector<128xf32>
    %66 = vector.shape_cast %65 : vector<128xf32> to vector<1x128xf32>
    %cst_36 = arith.constant 1.280000e+02 : f32
    %67 = vector.broadcast %cst_36 : f32 to vector<1x128xf32>
    %68 = arith.divf %66, %67 : vector<1x128xf32>
    %cst_37 = arith.constant 9.99999974E-6 : f32
    %69 = vector.broadcast %cst_37 : f32 to vector<1x128xf32>
    %70 = arith.addf %68, %69 : vector<1x128xf32>
    %71 = math.rsqrt %70 : vector<1x128xf32>
    %72 = arith.mulf %54, %71 : vector<1x128xf32>
    %73 = vector.broadcast %72 : vector<1x128xf32> to vector<128x128xf32>
    %74 = arith.mulf %63, %73 : vector<128x128xf32>
    %75 = vector.broadcast %55 : vector<1x128xf32> to vector<128x128xf32>
    %76 = arith.addf %74, %75 : vector<128x128xf32>
    %cst_38 = arith.constant 0.000000e+00 : f32
    %77 = vector.broadcast %cst_38 : f32 to vector<128x128xf32>
    %78 = arith.maximumf %76, %77 : vector<128x128xf32>
    %79 = arith.truncf %78 : vector<128x128xf32> to vector<128x128xbf16>
    %c0_39 = arith.constant 0 : index
    %c0_40 = arith.constant 0 : index
    %80 = vector.load %arg10[%c0_39, %c0_40] : memref<128x16xbf16, #tpu.memory_space<vmem>>, vector<128x16xbf16>
    %cst_41 = arith.constant dense<0.000000e+00> : vector<128x16xf32>
    %81 = tpu.matmul %79, %80, %cst_41 {dimension_numbers = #tpu.dot_dimension_numbers<[1], [0], [0], [1], [0, 0, 1, 1], [], []>} : vector<128x128xbf16>, vector<128x16xbf16>, vector<128x16xf32> -> vector<128x16xf32>
    %c0_42 = arith.constant 0 : index
    %c0_43 = arith.constant 0 : index
    %82 = vector.load %arg11[%c0_42, %c0_43] : memref<1x16xf32, #tpu.memory_space<vmem>>, vector<1x16xf32>
    %83 = vector.broadcast %82 : vector<1x16xf32> to vector<128x16xf32>
    %84 = arith.addf %81, %83 : vector<128x16xf32>
    %c0_44 = arith.constant 0 : index
    %c0_45 = arith.constant 0 : index
    %85 = vector.load %arg12[%c0_44, %c0_45] : memref<128x16xf32, #tpu.memory_space<vmem>>, vector<128x16xf32>
    tpu.vector_store %arg12[%c0_44, %c0_45], %84 {strides = array<i32>} : memref<128x16xf32, #tpu.memory_space<vmem>>, vector<128x16xf32>,
    return
  }
}

</mosaic_0001>

<llo_original>
// kernel: tpu_custom_call.1
$region0: #{tpu_custom_call.1}
  #allocation0 [shape = 'u32[]', space=smem, size = 0x4, offset = 0x4, fixed_abs, tag = 'smem constant byte address 0x4 - core index']
  #allocation1 [shape = 'u32[72,128]{1,0:T(1,128)}', space=vmem, size = 0x9000, scoped, tag = 'internal scratch']
  %s0 = inlined_call_operand.vmem [shape: f32[128,16], index: 0, kind: input, shape index: {}]
  %s1 = inlined_call_operand.vmem [shape: bf16[16,128], index: 1, kind: input, shape index: {}]
  %s2 = inlined_call_operand.vmem [shape: f32[1,128], index: 2, kind: input, shape index: {}]
  %s3 = inlined_call_operand.vmem [shape: f32[1,128], index: 3, kind: input, shape index: {}]
  %s4 = inlined_call_operand.vmem [shape: bf16[128,128], index: 4, kind: input, shape index: {}]
  %s5 = inlined_call_operand.vmem [shape: f32[1,128], index: 5, kind: input, shape index: {}]
  %s6 = inlined_call_operand.vmem [shape: f32[1,128], index: 6, kind: input, shape index: {}]
  %s7 = inlined_call_operand.vmem [shape: bf16[128,128], index: 7, kind: input, shape index: {}]
  %s8 = inlined_call_operand.vmem [shape: f32[1,128], index: 8, kind: input, shape index: {}]
  %s9 = inlined_call_operand.vmem [shape: f32[1,128], index: 9, kind: input, shape index: {}]
  %s10 = inlined_call_operand.vmem [shape: bf16[128,16], index: 10, kind: input, shape index: {}]
  %s11 = inlined_call_operand.vmem [shape: f32[1,16], index: 11, kind: input, shape index: {}]
  %s12 = inlined_call_operand.vmem [shape: f32[128,16], index: 12, kind: output, shape index: {}]
  %s13 = sld [smem:[#allocation0]]
  $region58: #{tpu_custom_call.1} parent=0
    _
  %s15 = ssub.s32 1, %s13
  %s16 = scalar_select 0, %s15, %s13
  // Predicated region
  $region2: #{tpu_custom_call.1} parent=0 // pred_check
    _
  $region3: #{tpu_custom_call.1} parent=0 // pred_check_branch
    %18 = sbr.rel (0) target = $region5
  $region4: #{tpu_custom_call.1} parent=0 // pred_region
    _
  $region5: #{tpu_custom_call.1} parent=0 // pred_fallthru
    _
  // Predicated region
  $region6: #{tpu_custom_call.1} parent=0 // pred_check
    _
  $region7: #{tpu_custom_call.1} parent=0 // pred_check_branch
    %20 = sbr.rel (0) target = $region9
  $region8: #{tpu_custom_call.1} parent=0 // pred_region
    _
  $region9: #{tpu_custom_call.1} parent=0 // pred_fallthru
    _
  // Predicated region
  $region10: #{tpu_custom_call.1} parent=0 // pred_check
    _
  $region11: #{tpu_custom_call.1} parent=0 // pred_check_branch
    %22 = sbr.rel (0) target = $region13
  $region12: #{tpu_custom_call.1} parent=0 // pred_region
    _
  $region13: #{tpu_custom_call.1} parent=0 // pred_fallthru
    _
  // Predicated region
  $region14: #{tpu_custom_call.1} parent=0 // pred_check
    _
  $region15: #{tpu_custom_call.1} parent=0 // pred_check_branch
    %24 = sbr.rel (0) target = $region17
  $region16: #{tpu_custom_call.1} parent=0 // pred_region
    _
  $region17: #{tpu_custom_call.1} parent=0 // pred_fallthru
    _
  // Predicated region
  $region18: #{tpu_custom_call.1} parent=0 // pred_check
    _
  $region19: #{tpu_custom_call.1} parent=0 // pred_check_branch
    %26 = sbr.rel (0) target = $region21
  $region20: #{tpu_custom_call.1} parent=0 // pred_region
    _
  $region21: #{tpu_custom_call.1} parent=0 // pred_fallthru
    _
  // Predicated region
  $region22: #{tpu_custom_call.1} parent=0 // pred_check
    _
  $region23: #{tpu_custom_call.1} parent=0 // pred_check_branch
    %28 = sbr.rel (0) target = $region25
  $region24: #{tpu_custom_call.1} parent=0 // pred_region
    _
  $region25: #{tpu_custom_call.1} parent=0 // pred_fallthru
    _
  // Predicated region
  $region26: #{tpu_custom_call.1} parent=0 // pred_check
    _
  $region27: #{tpu_custom_call.1} parent=0 // pred_check_branch
    %30 = sbr.rel (0) target = $region29
  $region28: #{tpu_custom_call.1} parent=0 // pred_region
    _
  $region29: #{tpu_custom_call.1} parent=0 // pred_fallthru
    _
  // Predicated region
  $region30: #{tpu_custom_call.1} parent=0 // pred_check
    _
  $region31: #{tpu_custom_call.1} parent=0 // pred_check_branch
    %32 = sbr.rel (0) target = $region33
  $region32: #{tpu_custom_call.1} parent=0 // pred_region
    _
  $region33: #{tpu_custom_call.1} parent=0 // pred_fallthru
    _
  // Predicated region
  $region34: #{tpu_custom_call.1} parent=0 // pred_check
    _
  $region35: #{tpu_custom_call.1} parent=0 // pred_check_branch
    %34 = sbr.rel (0) target = $region37
  $region36: #{tpu_custom_call.1} parent=0 // pred_region
    _
  $region37: #{tpu_custom_call.1} parent=0 // pred_fallthru
    _
  // Predicated region
  $region38: #{tpu_custom_call.1} parent=0 // pred_check
    _
  $region39: #{tpu_custom_call.1} parent=0 // pred_check_branch
    %36 = sbr.rel (0) target = $region41
  $region40: #{tpu_custom_call.1} parent=0 // pred_region
    _
  $region41: #{tpu_custom_call.1} parent=0 // pred_fallthru
    _
  // Predicated region
  $region42: #{tpu_custom_call.1} parent=0 // pred_check
    _
  $region43: #{tpu_custom_call.1} parent=0 // pred_check_branch
    %38 = sbr.rel (0) target = $region45
  $region44: #{tpu_custom_call.1} parent=0 // pred_region
    _
  $region45: #{tpu_custom_call.1} parent=0 // pred_fallthru
    _
  // Predicated region
  $region46: #{tpu_custom_call.1} parent=0 // pred_check
    _
  $region47: #{tpu_custom_call.1} parent=0 // pred_check_branch
    %40 = sbr.rel (0) target = $region49
  $region48: #{tpu_custom_call.1} parent=0 // pred_region
    _
  $region49: #{tpu_custom_call.1} parent=0 // pred_fallthru
    _
  %v42 = vld [vmem:[%s0] sm:$0xff]
  %v43 = vld [vmem:[%s0 + $0x8] sm:$0xff]
  %v44 = vld [vmem:[%s0 + $0x10] sm:$0xff]
  %v45 = vld [vmem:[%s0 + $0x18] sm:$0xff]
  %v46 = vld [vmem:[%s0 + $0x20] sm:$0xff]
  %v47 = vld [vmem:[%s0 + $0x28] sm:$0xff]
  %v48 = vld [vmem:[%s0 + $0x30] sm:$0xff]
  %v49 = vld [vmem:[%s0 + $0x38] sm:$0xff]
  %v50 = vld [vmem:[%s0 + $0x40] sm:$0xff]
  %v51 = vld [vmem:[%s0 + $0x48] sm:$0xff]
  %v52 = vld [vmem:[%s0 + $0x50] sm:$0xff]
  %v53 = vld [vmem:[%s0 + $0x58] sm:$0xff]
  %v54 = vld [vmem:[%s0 + $0x60] sm:$0xff]
  %v55 = vld [vmem:[%s0 + $0x68] sm:$0xff]
  %v56 = vld [vmem:[%s0 + $0x70] sm:$0xff]
  %v57 = vld [vmem:[%s0 + $0x78] sm:$0xff]
  %v58 = vld [vmem:[%s1] sm:$0xf]
  %v59 = vld [vmem:[%s1 + $0x4] sm:$0xf]
  %v60 = vld [vmem:[%s2] sm:$0x1]
  %v61 = vld [vmem:[%s3] sm:$0x1]
  %v62 = vpack.c.bf16 %v43, %v42
  %v63 = vpack.c.bf16 %v45, %v44
  %v64 = vpack.c.bf16 %v47, %v46
  %v65 = vpack.c.bf16 %v49, %v48
  %v66 = vpack.c.bf16 %v51, %v50
  %v67 = vpack.c.bf16 %v53, %v52
  %v68 = vpack.c.bf16 %v55, %v54
  %v69 = vpack.c.bf16 %v57, %v56
  %v72 = vunpack.c.l.b16 %v58
  %v73 = vunpack.c.l.b16 %v59
  %v74 = vpack.c.b16 %v73, %v72
  %vm76 = vcmask 130048
  %v78 = vsel %vm76, %v62, 0
  %v81 = vsel %vm76, %v63, 0
  %v84 = vsel %vm76, %v64, 0
  %v87 = vsel %vm76, %v65, 0
  %v90 = vsel %vm76, %v66, 0
  %v93 = vsel %vm76, %v67, 0
  %v96 = vsel %vm76, %v68, 0
  %v99 = vsel %vm76, %v69, 0
  %101 = vmatpush.bf16.msra.mxu0 0
  %102 = vmatpush.bf16.msra.mxu0 0
  %103 = vmatpush.bf16.msra.mxu0 0
  %104 = vmatpush.bf16.msra.mxu0 0
  %105 = vmatpush.bf16.msra.mxu0 0
  %106 = vmatpush.bf16.msra.mxu0 0
  %107 = vmatpush.bf16.msra.mxu0 0
  %108 = vmatpush.bf16.msra.mxu0 %v74
  %109 = vmatmul.bf16.gmra.mxu0 %v78
  %v110 = vpop.f32.mrf.mxu0
  %v111 = vadd.f32 0.0, %v110
  %v112 = vpop.f32.mrf.mxu0
  %v113 = vadd.f32 0.0, %v112
  %114 = vmatmul.bf16.gmra.mxu0 %v81
  %v115 = vpop.f32.mrf.mxu0
  %v116 = vadd.f32 0.0, %v115
  %v117 = vpop.f32.mrf.mxu0
  %v118 = vadd.f32 0.0, %v117
  %119 = vmatmul.bf16.gmra.mxu0 %v84
  %v120 = vpop.f32.mrf.mxu0
  %v121 = vadd.f32 0.0, %v120
  %v122 = vpop.f32.mrf.mxu0
  %v123 = vadd.f32 0.0, %v122
  %124 = vmatmul.bf16.gmra.mxu0 %v87
  %v125 = vpop.f32.mrf.mxu0
  %v126 = vadd.f32 0.0, %v125
  %v127 = vpop.f32.mrf.mxu0
  %v128 = vadd.f32 0.0, %v127
  %129 = vmatmul.bf16.gmra.mxu0 %v90
  %v130 = vpop.f32.mrf.mxu0
  %v131 = vadd.f32 0.0, %v130
  %v132 = vpop.f32.mrf.mxu0
  %v133 = vadd.f32 0.0, %v132
  %134 = vmatmul.bf16.gmra.mxu0 %v93
  %v135 = vpop.f32.mrf.mxu0
  %v136 = vadd.f32 0.0, %v135
  %v137 = vpop.f32.mrf.mxu0
  %v138 = vadd.f32 0.0, %v137
  %139 = vmatmul.bf16.gmra.mxu0 %v96
  %v140 = vpop.f32.mrf.mxu0
  %v141 = vadd.f32 0.0, %v140
  %v142 = vpop.f32.mrf.mxu0
  %v143 = vadd.f32 0.0, %v142
  %144 = vmatmul.bf16.gmra.mxu0 %v99
  %v145 = vpop.f32.mrf.mxu0
  %v146 = vadd.f32 0.0, %v145
  %v147 = vpop.f32.mrf.mxu0
  %v148 = vadd.f32 0.0, %v147
  %149 = vdwg.mxu0
  %v150 = vadd.f32 %v111, %v113
  %v151 = vadd.f32 %v150, %v116
  %v152 = vadd.f32 %v151, %v118
  %v153 = vadd.f32 %v152, %v121
  %v154 = vadd.f32 %v153, %v123
  %v155 = vadd.f32 %v154, %v126
  %v156 = vadd.f32 %v155, %v128
  %v157 = vadd.f32 %v156, %v131
  %v158 = vadd.f32 %v157, %v133
  %v159 = vadd.f32 %v158, %v136
  %v160 = vadd.f32 %v159, %v138
  %v161 = vadd.f32 %v160, %v141
  %v162 = vadd.f32 %v161, %v143
  %v163 = vadd.f32 %v162, %v146
  %v164 = vadd.f32 %v163, %v148
  %v165 = vrot.slane %v164, 4
  %v166 = vadd.f32 %v164, %v165
  %v167 = vrot.slane %v166, 2
  %v168 = vadd.f32 %v166, %v167
  %v169 = vrot.slane %v168, 1
  %v170 = vadd.f32 %v168, %v169
  %v171 = vrcp.pop 128.0
  %v172 = vmul.f32 128.0, %v171
  %v173 = vsub.f32 1.0, %v172
  %v174 = vmul.f32 %v171, %v173
  %v175 = vadd.f32 %v171, %v174
  %vm176 = vweird.f32 %v171
  %v177 = vsel %vm176, %v171, %v175
  %v178 = vmul.f32 %v170, %v177
  %v179 = vsub.f32 %v111, %v178
  %v180 = vsub.f32 %v113, %v178
  %v181 = vsub.f32 %v116, %v178
  %v182 = vsub.f32 %v118, %v178
  %v183 = vsub.f32 %v121, %v178
  %v184 = vsub.f32 %v123, %v178
  %v185 = vsub.f32 %v126, %v178
  %v186 = vsub.f32 %v128, %v178
  %v187 = vsub.f32 %v131, %v178
  %v188 = vsub.f32 %v133, %v178
  %v189 = vsub.f32 %v136, %v178
  %v190 = vsub.f32 %v138, %v178
  %v191 = vsub.f32 %v141, %v178
  %v192 = vsub.f32 %v143, %v178
  %v193 = vsub.f32 %v146, %v178
  %v194 = vsub.f32 %v148, %v178
  %v195 = vmul.f32 %v179, %v179
  %v196 = vmul.f32 %v180, %v180
  %v197 = vmul.f32 %v181, %v181
  %v198 = vmul.f32 %v182, %v182
  %v199 = vmul.f32 %v183, %v183
  %v200 = vmul.f32 %v184, %v184
  %v201 = vmul.f32 %v185, %v185
  %v202 = vmul.f32 %v186, %v186
  %v203 = vmul.f32 %v187, %v187
  %v204 = vmul.f32 %v188, %v188
  %v205 = vmul.f32 %v189, %v189
  %v206 = vmul.f32 %v190, %v190
  %v207 = vmul.f32 %v191, %v191
  %v208 = vmul.f32 %v192, %v192
  %v209 = vmul.f32 %v193, %v193
  %v210 = vmul.f32 %v194, %v194
  %v211 = vadd.f32 %v195, %v196
  %v212 = vadd.f32 %v211, %v197
  %v213 = vadd.f32 %v212, %v198
  %v214 = vadd.f32 %v213, %v199
  %v215 = vadd.f32 %v214, %v200
  %v216 = vadd.f32 %v215, %v201
  %v217 = vadd.f32 %v216, %v202
  %v218 = vadd.f32 %v217, %v203
  %v219 = vadd.f32 %v218, %v204
  %v220 = vadd.f32 %v219, %v205
  %v221 = vadd.f32 %v220, %v206
  %v222 = vadd.f32 %v221, %v207
  %v223 = vadd.f32 %v222, %v208
  %v224 = vadd.f32 %v223, %v209
  %v225 = vadd.f32 %v224, %v210
  %v226 = vrot.slane %v225, 4
  %v227 = vadd.f32 %v225, %v226
  %v228 = vrot.slane %v227, 2
  %v229 = vadd.f32 %v227, %v228
  %v230 = vrot.slane %v229, 1
  %v231 = vadd.f32 %v229, %v230
  %v232 = vmul.f32 %v231, %v177
  %v233 = vadd.f32 %v232, 1e-05
  %v234 = vrsqrt.pop %v233
  %v235 = vmul.f32 %v234, %v233
  %v236 = vmul.f32 %v235, %v234
  %v237 = vmul.f32 0.5, %v236
  %v238 = vsub.f32 1.5, %v237
  %v239 = vmul.f32 %v234, %v238
  %vm240 = vweird.f32 %v233
  %vm241 = vweird.f32 %v234
  %vm242 = vmor %vm240, %vm241
  %v243 = vsel %vm242, %v234, %v239
  %v244 = vmul.f32 %v60, %v243
  %v246 = vperm.slane %v244, 0
  %v248 = vmul.f32 %v179, %v246
  %v249 = vmul.f32 %v180, %v246
  %v250 = vmul.f32 %v181, %v246
  %v251 = vmul.f32 %v182, %v246
  %v252 = vmul.f32 %v183, %v246
  %v253 = vmul.f32 %v184, %v246
  %v254 = vmul.f32 %v185, %v246
  %v255 = vmul.f32 %v186, %v246
  %v256 = vmul.f32 %v187, %v246
  %v257 = vmul.f32 %v188, %v246
  %v258 = vmul.f32 %v189, %v246
  %v259 = vmul.f32 %v190, %v246
  %v260 = vmul.f32 %v191, %v246
  %v261 = vmul.f32 %v192, %v246
  %v262 = vmul.f32 %v193, %v246
  %v263 = vmul.f32 %v194, %v246
  %v265 = vperm.slane %v61, 0
  %v267 = vadd.f32 %v248, %v265
  %v268 = vadd.f32 %v249, %v265
  %v269 = vadd.f32 %v250, %v265
  %v270 = vadd.f32 %v251, %v265
  %v271 = vadd.f32 %v252, %v265
  %v272 = vadd.f32 %v253, %v265
  %v273 = vadd.f32 %v254, %v265
  %v274 = vadd.f32 %v255, %v265
  %v275 = vadd.f32 %v256, %v265
  %v276 = vadd.f32 %v257, %v265
  %v277 = vadd.f32 %v258, %v265
  %v278 = vadd.f32 %v259, %v265
  %v279 = vadd.f32 %v260, %v265
  %v280 = vadd.f32 %v261, %v265
  %v281 = vadd.f32 %v262, %v265
  %v282 = vadd.f32 %v263, %v265
  %v283 = vmax.f32 %v267, 0.0
  %v284 = vmax.f32 %v268, 0.0
  %v285 = vmax.f32 %v269, 0.0
  %v286 = vmax.f32 %v270, 0.0
  %v287 = vmax.f32 %v271, 0.0
  %v288 = vmax.f32 %v272, 0.0
  %v289 = vmax.f32 %v273, 0.0
  %v290 = vmax.f32 %v274, 0.0
  %v291 = vmax.f32 %v275, 0.0
  %v292 = vmax.f32 %v276, 0.0
  %v293 = vmax.f32 %v277, 0.0
  %v294 = vmax.f32 %v278, 0.0
  %v295 = vmax.f32 %v279, 0.0
  %v296 = vmax.f32 %v280, 0.0
  %v297 = vmax.f32 %v281, 0.0
  %v298 = vmax.f32 %v282, 0.0
  %v299 = vld [vmem:[%s4] sm:$0xf]
  %v300 = vld [vmem:[%s4 + $0x4] sm:$0xf]
  %v301 = vld [vmem:[%s4 + $0x8] sm:$0xf]
  %v302 = vld [vmem:[%s4 + $0xc] sm:$0xf]
  %v303 = vld [vmem:[%s4 + $0x10] sm:$0xf]
  %v304 = vld [vmem:[%s4 + $0x14] sm:$0xf]
  %v305 = vld [vmem:[%s4 + $0x18] sm:$0xf]
  %v306 = vld [vmem:[%s4 + $0x1c] sm:$0xf]
  %v307 = vld [vmem:[%s4 + $0x20] sm:$0xf]
  %v308 = vld [vmem:[%s4 + $0x24] sm:$0xf]
  %v309 = vld [vmem:[%s4 + $0x28] sm:$0xf]
  %v310 = vld [vmem:[%s4 + $0x2c] sm:$0xf]
  %v311 = vld [vmem:[%s4 + $0x30] sm:$0xf]
  %v312 = vld [vmem:[%s4 + $0x34] sm:$0xf]
  %v313 = vld [vmem:[%s4 + $0x38] sm:$0xf]
  %v314 = vld [vmem:[%s4 + $0x3c] sm:$0xf]
  %v315 = vld [vmem:[%s5] sm:$0x1]
  %v316 = vld [vmem:[%s6] sm:$0x1]
  %v317 = vpack.c.bf16 %v284, %v283
  %v318 = vpack.c.bf16 %v286, %v285
  %v319 = vpack.c.bf16 %v288, %v287
  %v320 = vpack.c.bf16 %v290, %v289
  %v321 = vpack.c.bf16 %v292, %v291
  %v322 = vpack.c.bf16 %v294, %v293
  %v323 = vpack.c.bf16 %v296, %v295
  %v324 = vpack.c.bf16 %v298, %v297
  %v341 = vunpack.c.l.b16 %v299
  %v342 = vunpack.c.l.b16 %v300
  %v343 = vunpack.c.l.b16 %v301
  %v344 = vunpack.c.l.b16 %v302
  %v345 = vunpack.c.l.b16 %v303
  %v346 = vunpack.c.l.b16 %v304
  %v347 = vunpack.c.l.b16 %v305
  %v348 = vunpack.c.l.b16 %v306
  %v349 = vunpack.c.l.b16 %v307
  %v350 = vunpack.c.l.b16 %v308
  %v351 = vunpack.c.l.b16 %v309
  %v352 = vunpack.c.l.b16 %v310
  %v353 = vunpack.c.l.b16 %v311
  %v354 = vunpack.c.l.b16 %v312
  %v355 = vunpack.c.l.b16 %v313
  %v356 = vunpack.c.l.b16 %v314
  %v357 = vpack.c.b16 %v342, %v341
  %v358 = vpack.c.b16 %v344, %v343
  %v359 = vpack.c.b16 %v346, %v345
  %v360 = vpack.c.b16 %v348, %v347
  %v361 = vpack.c.b16 %v350, %v349
  %v362 = vpack.c.b16 %v352, %v351
  %v363 = vpack.c.b16 %v354, %v353
  %v364 = vpack.c.b16 %v356, %v355
  %373 = vmatpush.bf16.msra.mxu0 %v364
  %374 = vmatpush.bf16.msra.mxu0 %v363
  %375 = vmatpush.bf16.msra.mxu0 %v362
  %376 = vmatpush.bf16.msra.mxu0 %v361
  %377 = vmatpush.bf16.msra.mxu0 %v360
  %378 = vmatpush.bf16.msra.mxu0 %v359
  %379 = vmatpush.bf16.msra.mxu0 %v358
  %380 = vmatpush.bf16.msra.mxu0 %v357
  %381 = vmatmul.bf16.gmra.mxu0 %v317
  %v382 = vpop.f32.mrf.mxu0
  %v383 = vadd.f32 0.0, %v382
  %v384 = vpop.f32.mrf.mxu0
  %v385 = vadd.f32 0.0, %v384
  %386 = vmatmul.bf16.gmra.mxu0 %v318
  %v387 = vpop.f32.mrf.mxu0
  %v388 = vadd.f32 0.0, %v387
  %v389 = vpop.f32.mrf.mxu0
  %v390 = vadd.f32 0.0, %v389
  %391 = vmatmul.bf16.gmra.mxu0 %v319
  %v392 = vpop.f32.mrf.mxu0
  %v393 = vadd.f32 0.0, %v392
  %v394 = vpop.f32.mrf.mxu0
  %v395 = vadd.f32 0.0, %v394
  %396 = vmatmul.bf16.gmra.mxu0 %v320
  %v397 = vpop.f32.mrf.mxu0
  %v398 = vadd.f32 0.0, %v397
  %v399 = vpop.f32.mrf.mxu0
  %v400 = vadd.f32 0.0, %v399
  %401 = vmatmul.bf16.gmra.mxu0 %v321
  %v402 = vpop.f32.mrf.mxu0
  %v403 = vadd.f32 0.0, %v402
  %v404 = vpop.f32.mrf.mxu0
  %v405 = vadd.f32 0.0, %v404
  %406 = vmatmul.bf16.gmra.mxu0 %v322
  %v407 = vpop.f32.mrf.mxu0
  %v408 = vadd.f32 0.0, %v407
  %v409 = vpop.f32.mrf.mxu0
  %v410 = vadd.f32 0.0, %v409
  %411 = vmatmul.bf16.gmra.mxu0 %v323
  %v412 = vpop.f32.mrf.mxu0
  %v413 = vadd.f32 0.0, %v412
  %v414 = vpop.f32.mrf.mxu0
  %v415 = vadd.f32 0.0, %v414
  %416 = vmatmul.bf16.gmra.mxu0 %v324
  %v417 = vpop.f32.mrf.mxu0
  %v418 = vadd.f32 0.0, %v417
  %v419 = vpop.f32.mrf.mxu0
  %v420 = vadd.f32 0.0, %v419
  %421 = vdwg.mxu0
  %v422 = vadd.f32 %v383, %v385
  %v423 = vadd.f32 %v422, %v388
  %v424 = vadd.f32 %v423, %v390
  %v425 = vadd.f32 %v424, %v393
  %v426 = vadd.f32 %v425, %v395
  %v427 = vadd.f32 %v426, %v398
  %v428 = vadd.f32 %v427, %v400
  %v429 = vadd.f32 %v428, %v403
  %v430 = vadd.f32 %v429, %v405
  %v431 = vadd.f32 %v430, %v408
  %v432 = vadd.f32 %v431, %v410
  %v433 = vadd.f32 %v432, %v413
  %v434 = vadd.f32 %v433, %v415
  %v435 = vadd.f32 %v434, %v418
  %v436 = vadd.f32 %v435, %v420
  %v437 = vrot.slane %v436, 4
  %v438 = vadd.f32 %v436, %v437
  %v439 = vrot.slane %v438, 2
  %v440 = vadd.f32 %v438, %v439
  %v441 = vrot.slane %v440, 1
  %v442 = vadd.f32 %v440, %v441
  %v443 = vmul.f32 %v442, %v177
  %v444 = vsub.f32 %v383, %v443
  %v445 = vsub.f32 %v385, %v443
  %v446 = vsub.f32 %v388, %v443
  %v447 = vsub.f32 %v390, %v443
  %v448 = vsub.f32 %v393, %v443
  %v449 = vsub.f32 %v395, %v443
  %v450 = vsub.f32 %v398, %v443
  %v451 = vsub.f32 %v400, %v443
  %v452 = vsub.f32 %v403, %v443
  %v453 = vsub.f32 %v405, %v443
  %v454 = vsub.f32 %v408, %v443
  %v455 = vsub.f32 %v410, %v443
  %v456 = vsub.f32 %v413, %v443
  %v457 = vsub.f32 %v415, %v443
  %v458 = vsub.f32 %v418, %v443
  %v459 = vsub.f32 %v420, %v443
  %v460 = vmul.f32 %v444, %v444
  %v461 = vmul.f32 %v445, %v445
  %v462 = vmul.f32 %v446, %v446
  %v463 = vmul.f32 %v447, %v447
  %v464 = vmul.f32 %v448, %v448
  %v465 = vmul.f32 %v449, %v449
  %v466 = vmul.f32 %v450, %v450
  %v467 = vmul.f32 %v451, %v451
  %v468 = vmul.f32 %v452, %v452
  %v469 = vmul.f32 %v453, %v453
  %v470 = vmul.f32 %v454, %v454
  %v471 = vmul.f32 %v455, %v455
  %v472 = vmul.f32 %v456, %v456
  %v473 = vmul.f32 %v457, %v457
  %v474 = vmul.f32 %v458, %v458
  %v475 = vmul.f32 %v459, %v459
  %v476 = vadd.f32 %v460, %v461
  %v477 = vadd.f32 %v476, %v462
  %v478 = vadd.f32 %v477, %v463
  %v479 = vadd.f32 %v478, %v464
  %v480 = vadd.f32 %v479, %v465
  %v481 = vadd.f32 %v480, %v466
  %v482 = vadd.f32 %v481, %v467
  %v483 = vadd.f32 %v482, %v468
  %v484 = vadd.f32 %v483, %v469
  %v485 = vadd.f32 %v484, %v470
  %v486 = vadd.f32 %v485, %v471
  %v487 = vadd.f32 %v486, %v472
  %v488 = vadd.f32 %v487, %v473
  %v489 = vadd.f32 %v488, %v474
  %v490 = vadd.f32 %v489, %v475
  %v491 = vrot.slane %v490, 4
  %v492 = vadd.f32 %v490, %v491
  %v493 = vrot.slane %v492, 2
  %v494 = vadd.f32 %v492, %v493
  %v495 = vrot.slane %v494, 1
  %v496 = vadd.f32 %v494, %v495
  %v497 = vmul.f32 %v496, %v177
  %v498 = vadd.f32 %v497, 1e-05
  %v499 = vrsqrt.pop %v498
  %v500 = vmul.f32 %v499, %v498
  %v501 = vmul.f32 %v500, %v499
  %v502 = vmul.f32 0.5, %v501
  %v503 = vsub.f32 1.5, %v502
  %v504 = vmul.f32 %v499, %v503
  %vm505 = vweird.f32 %v498
  %vm506 = vweird.f32 %v499
  %vm507 = vmor %vm505, %vm506
  %v508 = vsel %vm507, %v499, %v504
  %v509 = vmul.f32 %v315, %v508
  %v511 = vperm.slane %v509, 0
  %v513 = vmul.f32 %v444, %v511
  %v514 = vmul.f32 %v445, %v511
  %v515 = vmul.f32 %v446, %v511
  %v516 = vmul.f32 %v447, %v511
  %v517 = vmul.f32 %v448, %v511
  %v518 = vmul.f32 %v449, %v511
  %v519 = vmul.f32 %v450, %v511
  %v520 = vmul.f32 %v451, %v511
  %v521 = vmul.f32 %v452, %v511
  %v522 = vmul.f32 %v453, %v511
  %v523 = vmul.f32 %v454, %v511
  %v524 = vmul.f32 %v455, %v511
  %v525 = vmul.f32 %v456, %v511
  %v526 = vmul.f32 %v457, %v511
  %v527 = vmul.f32 %v458, %v511
  %v528 = vmul.f32 %v459, %v511
  %v530 = vperm.slane %v316, 0
  %v532 = vadd.f32 %v513, %v530
  %v533 = vadd.f32 %v514, %v530
  %v534 = vadd.f32 %v515, %v530
  %v535 = vadd.f32 %v516, %v530
  %v536 = vadd.f32 %v517, %v530
  %v537 = vadd.f32 %v518, %v530
  %v538 = vadd.f32 %v519, %v530
  %v539 = vadd.f32 %v520, %v530
  %v540 = vadd.f32 %v521, %v530
  %v541 = vadd.f32 %v522, %v530
  %v542 = vadd.f32 %v523, %v530
  %v543 = vadd.f32 %v524, %v530
  %v544 = vadd.f32 %v525, %v530
  %v545 = vadd.f32 %v526, %v530
  %v546 = vadd.f32 %v527, %v530
  %v547 = vadd.f32 %v528, %v530
  %v548 = vmax.f32 %v532, 0.0
  %v549 = vmax.f32 %v533, 0.0
  %v550 = vmax.f32 %v534, 0.0
  %v551 = vmax.f32 %v535, 0.0
  %v552 = vmax.f32 %v536, 0.0
  %v553 = vmax.f32 %v537, 0.0
  %v554 = vmax.f32 %v538, 0.0
  %v555 = vmax.f32 %v539, 0.0
  %v556 = vmax.f32 %v540, 0.0
  %v557 = vmax.f32 %v541, 0.0
  %v558 = vmax.f32 %v542, 0.0
  %v559 = vmax.f32 %v543, 0.0
  %v560 = vmax.f32 %v544, 0.0
  %v561 = vmax.f32 %v545, 0.0
  %v562 = vmax.f32 %v546, 0.0
  %v563 = vmax.f32 %v547, 0.0
  %v564 = vld [vmem:[%s7] sm:$0xf]
  %v565 = vld [vmem:[%s7 + $0x4] sm:$0xf]
  %v566 = vld [vmem:[%s7 + $0x8] sm:$0xf]
  %v567 = vld [vmem:[%s7 + $0xc] sm:$0xf]
  %v568 = vld [vmem:[%s7 + $0x10] sm:$0xf]
  %v569 = vld [vmem:[%s7 + $0x14] sm:$0xf]
  %v570 = vld [vmem:[%s7 + $0x18] sm:$0xf]
  %v571 = vld [vmem:[%s7 + $0x1c] sm:$0xf]
  %v572 = vld [vmem:[%s7 + $0x20] sm:$0xf]
  %v573 = vld [vmem:[%s7 + $0x24] sm:$0xf]
  %v574 = vld [vmem:[%s7 + $0x28] sm:$0xf]
  %v575 = vld [vmem:[%s7 + $0x2c] sm:$0xf]
  %v576 = vld [vmem:[%s7 + $0x30] sm:$0xf]
  %v577 = vld [vmem:[%s7 + $0x34] sm:$0xf]
  %v578 = vld [vmem:[%s7 + $0x38] sm:$0xf]
  %v579 = vld [vmem:[%s7 + $0x3c] sm:$0xf]
  %v580 = vld [vmem:[%s8] sm:$0x1]
  %v581 = vld [vmem:[%s9] sm:$0x1]
  %v582 = vpack.c.bf16 %v549, %v548
  %v583 = vpack.c.bf16 %v551, %v550
  %v584 = vpack.c.bf16 %v553, %v552
  %v585 = vpack.c.bf16 %v555, %v554
  %v586 = vpack.c.bf16 %v557, %v556
  %v587 = vpack.c.bf16 %v559, %v558
  %v588 = vpack.c.bf16 %v561, %v560
  %v589 = vpack.c.bf16 %v563, %v562
  %v606 = vunpack.c.l.b16 %v564
  %v607 = vunpack.c.l.b16 %v565
  %v608 = vunpack.c.l.b16 %v566
  %v609 = vunpack.c.l.b16 %v567
  %v610 = vunpack.c.l.b16 %v568
  %v611 = vunpack.c.l.b16 %v569
  %v612 = vunpack.c.l.b16 %v570
  %v613 = vunpack.c.l.b16 %v571
  %v614 = vunpack.c.l.b16 %v572
  %v615 = vunpack.c.l.b16 %v573
  %v616 = vunpack.c.l.b16 %v574
  %v617 = vunpack.c.l.b16 %v575
  %v618 = vunpack.c.l.b16 %v576
  %v619 = vunpack.c.l.b16 %v577
  %v620 = vunpack.c.l.b16 %v578
  %v621 = vunpack.c.l.b16 %v579
  %v622 = vpack.c.b16 %v607, %v606
  %v623 = vpack.c.b16 %v609, %v608
  %v624 = vpack.c.b16 %v611, %v610
  %v625 = vpack.c.b16 %v613, %v612
  %v626 = vpack.c.b16 %v615, %v614
  %v627 = vpack.c.b16 %v617, %v616
  %v628 = vpack.c.b16 %v619, %v618
  %v629 = vpack.c.b16 %v621, %v620
  %638 = vmatpush.bf16.msra.mxu0 %v629
  %639 = vmatpush.bf16.msra.mxu0 %v628
  %640 = vmatpush.bf16.msra.mxu0 %v627
  %641 = vmatpush.bf16.msra.mxu0 %v626
  %642 = vmatpush.bf16.msra.mxu0 %v625
  %643 = vmatpush.bf16.msra.mxu0 %v624
  %644 = vmatpush.bf16.msra.mxu0 %v623
  %645 = vmatpush.bf16.msra.mxu0 %v622
  %646 = vmatmul.bf16.gmra.mxu0 %v582
  %v647 = vpop.f32.mrf.mxu0
  %v648 = vadd.f32 0.0, %v647
  %v649 = vpop.f32.mrf.mxu0
  %v650 = vadd.f32 0.0, %v649
  %651 = vmatmul.bf16.gmra.mxu0 %v583
  %v652 = vpop.f32.mrf.mxu0
  %v653 = vadd.f32 0.0, %v652
  %v654 = vpop.f32.mrf.mxu0
  %v655 = vadd.f32 0.0, %v654
  %656 = vmatmul.bf16.gmra.mxu0 %v584
  %v657 = vpop.f32.mrf.mxu0
  %v658 = vadd.f32 0.0, %v657
  %v659 = vpop.f32.mrf.mxu0
  %v660 = vadd.f32 0.0, %v659
  %661 = vmatmul.bf16.gmra.mxu0 %v585
  %v662 = vpop.f32.mrf.mxu0
  %v663 = vadd.f32 0.0, %v662
  %v664 = vpop.f32.mrf.mxu0
  %v665 = vadd.f32 0.0, %v664
  %666 = vmatmul.bf16.gmra.mxu0 %v586
  %v667 = vpop.f32.mrf.mxu0
  %v668 = vadd.f32 0.0, %v667
  %v669 = vpop.f32.mrf.mxu0
  %v670 = vadd.f32 0.0, %v669
  %671 = vmatmul.bf16.gmra.mxu0 %v587
  %v672 = vpop.f32.mrf.mxu0
  %v673 = vadd.f32 0.0, %v672
  %v674 = vpop.f32.mrf.mxu0
  %v675 = vadd.f32 0.0, %v674
  %676 = vmatmul.bf16.gmra.mxu0 %v588
  %v677 = vpop.f32.mrf.mxu0
  %v678 = vadd.f32 0.0, %v677
  %v679 = vpop.f32.mrf.mxu0
  %v680 = vadd.f32 0.0, %v679
  %681 = vmatmul.bf16.gmra.mxu0 %v589
  %v682 = vpop.f32.mrf.mxu0
  %v683 = vadd.f32 0.0, %v682
  %v684 = vpop.f32.mrf.mxu0
  %v685 = vadd.f32 0.0, %v684
  %686 = vdwg.mxu0
  %v687 = vadd.f32 %v648, %v650
  %v688 = vadd.f32 %v687, %v653
  %v689 = vadd.f32 %v688, %v655
  %v690 = vadd.f32 %v689, %v658
  %v691 = vadd.f32 %v690, %v660
  %v692 = vadd.f32 %v691, %v663
  %v693 = vadd.f32 %v692, %v665
  %v694 = vadd.f32 %v693, %v668
  %v695 = vadd.f32 %v694, %v670
  %v696 = vadd.f32 %v695, %v673
  %v697 = vadd.f32 %v696, %v675
  %v698 = vadd.f32 %v697, %v678
  %v699 = vadd.f32 %v698, %v680
  %v700 = vadd.f32 %v699, %v683
  %v701 = vadd.f32 %v700, %v685
  %v702 = vrot.slane %v701, 4
  %v703 = vadd.f32 %v701, %v702
  %v704 = vrot.slane %v703, 2
  %v705 = vadd.f32 %v703, %v704
  %v706 = vrot.slane %v705, 1
  %v707 = vadd.f32 %v705, %v706
  %v708 = vmul.f32 %v707, %v177
  %v709 = vsub.f32 %v648, %v708
  %v710 = vsub.f32 %v650, %v708
  %v711 = vsub.f32 %v653, %v708
  %v712 = vsub.f32 %v655, %v708
  %v713 = vsub.f32 %v658, %v708
  %v714 = vsub.f32 %v660, %v708
  %v715 = vsub.f32 %v663, %v708
  %v716 = vsub.f32 %v665, %v708
  %v717 = vsub.f32 %v668, %v708
  %v718 = vsub.f32 %v670, %v708
  %v719 = vsub.f32 %v673, %v708
  %v720 = vsub.f32 %v675, %v708
  %v721 = vsub.f32 %v678, %v708
  %v722 = vsub.f32 %v680, %v708
  %v723 = vsub.f32 %v683, %v708
  %v724 = vsub.f32 %v685, %v708
  %v725 = vmul.f32 %v709, %v709
  %v726 = vmul.f32 %v710, %v710
  %v727 = vmul.f32 %v711, %v711
  %v728 = vmul.f32 %v712, %v712
  %v729 = vmul.f32 %v713, %v713
  %v730 = vmul.f32 %v714, %v714
  %v731 = vmul.f32 %v715, %v715
  %v732 = vmul.f32 %v716, %v716
  %v733 = vmul.f32 %v717, %v717
  %v734 = vmul.f32 %v718, %v718
  %v735 = vmul.f32 %v719, %v719
  %v736 = vmul.f32 %v720, %v720
  %v737 = vmul.f32 %v721, %v721
  %v738 = vmul.f32 %v722, %v722
  %v739 = vmul.f32 %v723, %v723
  %v740 = vmul.f32 %v724, %v724
  %v741 = vadd.f32 %v725, %v726
  %v742 = vadd.f32 %v741, %v727
  %v743 = vadd.f32 %v742, %v728
  %v744 = vadd.f32 %v743, %v729
  %v745 = vadd.f32 %v744, %v730
  %v746 = vadd.f32 %v745, %v731
  %v747 = vadd.f32 %v746, %v732
  %v748 = vadd.f32 %v747, %v733
  %v749 = vadd.f32 %v748, %v734
  %v750 = vadd.f32 %v749, %v735
  %v751 = vadd.f32 %v750, %v736
  %v752 = vadd.f32 %v751, %v737
  %v753 = vadd.f32 %v752, %v738
  %v754 = vadd.f32 %v753, %v739
  %v755 = vadd.f32 %v754, %v740
  %v756 = vrot.slane %v755, 4
  %v757 = vadd.f32 %v755, %v756
  %v758 = vrot.slane %v757, 2
  %v759 = vadd.f32 %v757, %v758
  %v760 = vrot.slane %v759, 1
  %v761 = vadd.f32 %v759, %v760
  %v762 = vmul.f32 %v761, %v177
  %v763 = vadd.f32 %v762, 1e-05
  %v764 = vrsqrt.pop %v763
  %v765 = vmul.f32 %v764, %v763
  %v766 = vmul.f32 %v765, %v764
  %v767 = vmul.f32 0.5, %v766
  %v768 = vsub.f32 1.5, %v767
  %v769 = vmul.f32 %v764, %v768
  %vm770 = vweird.f32 %v763
  %vm771 = vweird.f32 %v764
  %vm772 = vmor %vm770, %vm771
  %v773 = vsel %vm772, %v764, %v769
  %v774 = vmul.f32 %v580, %v773
  %v776 = vperm.slane %v774, 0
  %v778 = vmul.f32 %v709, %v776
  %v779 = vmul.f32 %v710, %v776
  %v780 = vmul.f32 %v711, %v776
  %v781 = vmul.f32 %v712, %v776
  %v782 = vmul.f32 %v713, %v776
  %v783 = vmul.f32 %v714, %v776
  %v784 = vmul.f32 %v715, %v776
  %v785 = vmul.f32 %v716, %v776
  %v786 = vmul.f32 %v717, %v776
  %v787 = vmul.f32 %v718, %v776
  %v788 = vmul.f32 %v719, %v776
  %v789 = vmul.f32 %v720, %v776
  %v790 = vmul.f32 %v721, %v776
  %v791 = vmul.f32 %v722, %v776
  %v792 = vmul.f32 %v723, %v776
  %v793 = vmul.f32 %v724, %v776
  %v795 = vperm.slane %v581, 0
  %v797 = vadd.f32 %v778, %v795
  %v798 = vadd.f32 %v779, %v795
  %v799 = vadd.f32 %v780, %v795
  %v800 = vadd.f32 %v781, %v795
  %v801 = vadd.f32 %v782, %v795
  %v802 = vadd.f32 %v783, %v795
  %v803 = vadd.f32 %v784, %v795
  %v804 = vadd.f32 %v785, %v795
  %v805 = vadd.f32 %v786, %v795
  %v806 = vadd.f32 %v787, %v795
  %v807 = vadd.f32 %v788, %v795
  %v808 = vadd.f32 %v789, %v795
  %v809 = vadd.f32 %v790, %v795
  %v810 = vadd.f32 %v791, %v795
  %v811 = vadd.f32 %v792, %v795
  %v812 = vadd.f32 %v793, %v795
  %v813 = vmax.f32 %v797, 0.0
  %v814 = vmax.f32 %v798, 0.0
  %v815 = vmax.f32 %v799, 0.0
  %v816 = vmax.f32 %v800, 0.0
  %v817 = vmax.f32 %v801, 0.0
  %v818 = vmax.f32 %v802, 0.0
  %v819 = vmax.f32 %v803, 0.0
  %v820 = vmax.f32 %v804, 0.0
  %v821 = vmax.f32 %v805, 0.0
  %v822 = vmax.f32 %v806, 0.0
  %v823 = vmax.f32 %v807, 0.0
  %v824 = vmax.f32 %v808, 0.0
  %v825 = vmax.f32 %v809, 0.0
  %v826 = vmax.f32 %v810, 0.0
  %v827 = vmax.f32 %v811, 0.0
  %v828 = vmax.f32 %v812, 0.0
  %v829 = vpack.c.bf16 %v814, %v813
  %v830 = vpack.c.bf16 %v816, %v815
  %v831 = vpack.c.bf16 %v818, %v817
  %v832 = vpack.c.bf16 %v820, %v819
  %v833 = vpack.c.bf16 %v822, %v821
  %v834 = vpack.c.bf16 %v824, %v823
  %v835 = vpack.c.bf16 %v826, %v825
  %v836 = vpack.c.bf16 %v828, %v827
  %v837 = vld [vmem:[%s10] sm:$0xf]
  %v838 = vld [vmem:[%s10 + $0x4] sm:$0xf]
  %v839 = vld [vmem:[%s10 + $0x8] sm:$0xf]
  %v840 = vld [vmem:[%s10 + $0xc] sm:$0xf]
  %v841 = vld [vmem:[%s10 + $0x10] sm:$0xf]
  %v842 = vld [vmem:[%s10 + $0x14] sm:$0xf]
  %v843 = vld [vmem:[%s10 + $0x18] sm:$0xf]
  %v844 = vld [vmem:[%s10 + $0x1c] sm:$0xf]
  %v845 = vld [vmem:[%s10 + $0x20] sm:$0xf]
  %v846 = vld [vmem:[%s10 + $0x24] sm:$0xf]
  %v847 = vld [vmem:[%s10 + $0x28] sm:$0xf]
  %v848 = vld [vmem:[%s10 + $0x2c] sm:$0xf]
  %v849 = vld [vmem:[%s10 + $0x30] sm:$0xf]
  %v850 = vld [vmem:[%s10 + $0x34] sm:$0xf]
  %v851 = vld [vmem:[%s10 + $0x38] sm:$0xf]
  %v852 = vld [vmem:[%s10 + $0x3c] sm:$0xf]
  %v853 = vld [vmem:[%s11] sm:$0x1]
  %v855 = vperm.slane %v853, 0
  %v873 = vunpack.c.l.b16 %v837
  %v874 = vunpack.c.l.b16 %v838
  %v875 = vunpack.c.l.b16 %v839
  %v876 = vunpack.c.l.b16 %v840
  %v877 = vunpack.c.l.b16 %v841
  %v878 = vunpack.c.l.b16 %v842
  %v879 = vunpack.c.l.b16 %v843
  %v880 = vunpack.c.l.b16 %v844
  %v881 = vunpack.c.l.b16 %v845
  %v882 = vunpack.c.l.b16 %v846
  %v883 = vunpack.c.l.b16 %v847
  %v884 = vunpack.c.l.b16 %v848
  %v885 = vunpack.c.l.b16 %v849
  %v886 = vunpack.c.l.b16 %v850
  %v887 = vunpack.c.l.b16 %v851
  %v888 = vunpack.c.l.b16 %v852
  %v889 = vpack.c.b16 %v874, %v873
  %v890 = vpack.c.b16 %v876, %v875
  %v891 = vpack.c.b16 %v878, %v877
  %v892 = vpack.c.b16 %v880, %v879
  %v893 = vpack.c.b16 %v882, %v881
  %v894 = vpack.c.b16 %v884, %v883
  %v895 = vpack.c.b16 %v886, %v885
  %v896 = vpack.c.b16 %v888, %v887
  %905 = vmatpush.bf16.msra.mxu0 %v896
  %906 = vmatpush.bf16.msra.mxu0 %v895
  %907 = vmatpush.bf16.msra.mxu0 %v894
  %908 = vmatpush.bf16.msra.mxu0 %v893
  %909 = vmatpush.bf16.msra.mxu0 %v892
  %910 = vmatpush.bf16.msra.mxu0 %v891
  %911 = vmatpush.bf16.msra.mxu0 %v890
  %912 = vmatpush.bf16.msra.mxu0 %v889
  %913 = vmatmul.bf16.gmra.mxu0 %v829
  %v914 = vpop.f32.mrf.mxu0
  %v915 = vadd.f32 %v855, %v914
  %v916 = vpop.f32.mrf.mxu0
  %v917 = vadd.f32 %v855, %v916
  %918 = vmatmul.bf16.gmra.mxu0 %v830
  %v919 = vpop.f32.mrf.mxu0
  %v920 = vadd.f32 %v855, %v919
  %v921 = vpop.f32.mrf.mxu0
  %v922 = vadd.f32 %v855, %v921
  %923 = vmatmul.bf16.gmra.mxu0 %v831
  %v924 = vpop.f32.mrf.mxu0
  %v925 = vadd.f32 %v855, %v924
  %v926 = vpop.f32.mrf.mxu0
  %v927 = vadd.f32 %v855, %v926
  %928 = vmatmul.bf16.gmra.mxu0 %v832
  %v929 = vpop.f32.mrf.mxu0
  %v930 = vadd.f32 %v855, %v929
  %v931 = vpop.f32.mrf.mxu0
  %v932 = vadd.f32 %v855, %v931
  %933 = vmatmul.bf16.gmra.mxu0 %v833
  %v934 = vpop.f32.mrf.mxu0
  %v935 = vadd.f32 %v855, %v934
  %v936 = vpop.f32.mrf.mxu0
  %v937 = vadd.f32 %v855, %v936
  %938 = vmatmul.bf16.gmra.mxu0 %v834
  %v939 = vpop.f32.mrf.mxu0
  %v940 = vadd.f32 %v855, %v939
  %v941 = vpop.f32.mrf.mxu0
  %v942 = vadd.f32 %v855, %v941
  %943 = vmatmul.bf16.gmra.mxu0 %v835
  %v944 = vpop.f32.mrf.mxu0
  %v945 = vadd.f32 %v855, %v944
  %v946 = vpop.f32.mrf.mxu0
  %v947 = vadd.f32 %v855, %v946
  %948 = vmatmul.bf16.gmra.mxu0 %v836
  %v949 = vpop.f32.mrf.mxu0
  %v950 = vadd.f32 %v855, %v949
  %v951 = vpop.f32.mrf.mxu0
  %v952 = vadd.f32 %v855, %v951
  %953 = vdwg.mxu0
  %954 = vst.msk [vmem:[%s12] sm:$0xff] %vm76, %v915
  %955 = vst.msk [vmem:[%s12 + $0x8] sm:$0xff] %vm76, %v917
  %956 = vst.msk [vmem:[%s12 + $0x10] sm:$0xff] %vm76, %v920
  %957 = vst.msk [vmem:[%s12 + $0x18] sm:$0xff] %vm76, %v922
  %958 = vst.msk [vmem:[%s12 + $0x20] sm:$0xff] %vm76, %v925
  %959 = vst.msk [vmem:[%s12 + $0x28] sm:$0xff] %vm76, %v927
  %960 = vst.msk [vmem:[%s12 + $0x30] sm:$0xff] %vm76, %v930
  %961 = vst.msk [vmem:[%s12 + $0x38] sm:$0xff] %vm76, %v932
  %962 = vst.msk [vmem:[%s12 + $0x40] sm:$0xff] %vm76, %v935
  %963 = vst.msk [vmem:[%s12 + $0x48] sm:$0xff] %vm76, %v937
  %964 = vst.msk [vmem:[%s12 + $0x50] sm:$0xff] %vm76, %v940
  %965 = vst.msk [vmem:[%s12 + $0x58] sm:$0xff] %vm76, %v942
  %966 = vst.msk [vmem:[%s12 + $0x60] sm:$0xff] %vm76, %v945
  %967 = vst.msk [vmem:[%s12 + $0x68] sm:$0xff] %vm76, %v947
  %968 = vst.msk [vmem:[%s12 + $0x70] sm:$0xff] %vm76, %v950
  %969 = vst.msk [vmem:[%s12 + $0x78] sm:$0xff] %vm76, %v952
  // Predicated region
  $region50: #{tpu_custom_call.1} parent=0 // pred_check
    _
  $region51: #{tpu_custom_call.1} parent=0 // pred_check_branch
    %971 = sbr.rel (0) target = $region53
  $region52: #{tpu_custom_call.1} parent=0 // pred_region
    _
  $region53: #{tpu_custom_call.1} parent=0 // pred_fallthru
    _
  // Predicated region
  $region54: #{tpu_custom_call.1} parent=0 // pred_check
    _
  $region55: #{tpu_custom_call.1} parent=0 // pred_check_branch
    %973 = sbr.rel (0) target = $region57
  $region56: #{tpu_custom_call.1} parent=0 // pred_region
    _
  $region57: #{tpu_custom_call.1} parent=0 // pred_fallthru
    _

</llo_original>
